<compile_context>
chip_gen: v7x
topology: tpu7x:2x2x1
jax: 0.10.0
libtpu: 0.0.40
codegen_flags: <defaults>
</compile_context>

<pallas_src>
import jax
import jax.numpy as jnp
from jax.experimental import pallas as pl
from jax.experimental.pallas import tpu as pltpu


def _linear_vpu_kernel(x_ref, w_ref, b_ref, o_ref):
    """VPU-only linear in natural row-major layout.

    x_ref: (N, IN) f32 in VMEM   (row-major flatten of x1's leading dims)
    w_ref: (OUT*IN,) f32 in SMEM (row-major flatten of the (OUT, IN) weight)
    b_ref: (OUT,) f32 in SMEM
    o_ref: (N, OUT) f32 in VMEM
    """
    N, IN = x_ref.shape
    OUT = o_ref.shape[1]
    x = x_ref[...]                                    # one small VMEM load
    for o in range(OUT):                              # static unroll (OUT == 2)
        acc = x[:, 0:1] * w_ref[o * IN + 0]           # scalar-broadcast vmul
        for i in range(1, IN):                        # static unroll (IN == 2)
            acc = acc + x[:, i:i + 1] * w_ref[o * IN + i]
        # Direct per-column store: no concat, no extra vreg shuffle.
        o_ref[:, o:o + 1] = (acc + b_ref[o]).astype(o_ref.dtype)


def linear_pallas(x2d, weight, bias):
    """x2d: (N, IN) f32, weight: (OUT, IN) f32, bias: (OUT,) f32 -> (N, OUT) f32."""
    N, IN = x2d.shape
    OUT = weight.shape[0]
    w_flat = weight.reshape(-1)                       # (OUT*IN,), goes to SMEM
    cost = pl.CostEstimate(
        flops=2 * OUT * IN * N,
        transcendentals=0,
        bytes_accessed=(N * IN + N * OUT + OUT * IN + OUT) * 4,
    )
    return pl.pallas_call(
        _linear_vpu_kernel,
        out_shape=jax.ShapeDtypeStruct((N, OUT), x2d.dtype),
        in_specs=[
            pl.BlockSpec(memory_space=pltpu.MemorySpace.VMEM),   # activations
            pl.BlockSpec(memory_space=pltpu.MemorySpace.SMEM),   # weight scalars
            pl.BlockSpec(memory_space=pltpu.MemorySpace.SMEM),   # bias scalars
        ],
        out_specs=pl.BlockSpec(memory_space=pltpu.MemorySpace.VMEM),
        cost_estimate=cost,
    )(x2d, w_flat, bias)


def model_forward(x1, weight, bias):
    """Reproduces Model.forward exactly (chunk(1) and squeeze(dim=-2) are no-ops here)."""
    in_features = x1.shape[-1]
    out_features = weight.shape[0]
    lead = x1.shape[:-1]
    x2d = x1.reshape(-1, in_features)                 # bitcast reshape, no transpose
    y2d = linear_pallas(x2d, weight, bias)            # single device op
    return y2d.reshape(*lead, out_features)           # bitcast reshape back


def init_linear_params(key, out_features, in_features):
    # Deterministic init mimicking torch.nn.Linear default:
    # U(-1/sqrt(in_features), 1/sqrt(in_features)) for both weight and bias.
    kw, kb = jax.random.split(key)
    bound = 1.0 / (in_features ** 0.5)
    weight = jax.random.uniform(
        kw, (out_features, in_features), jnp.float32, minval=-bound, maxval=bound
    )
    bias = jax.random.uniform(
        kb, (out_features,), jnp.float32, minval=-bound, maxval=bound
    )
    return weight, bias


if __name__ == "__main__":
    key = jax.random.PRNGKey(0)
    k_x, k_p = jax.random.split(key)

    # Matches torch.rand(2, 2, 2, 2, 2, 2)
    x1 = jax.random.uniform(k_x, (2, 2, 2, 2, 2, 2), jnp.float32)
    weight, bias = init_linear_params(k_p, 2, 2)

    out = jax.jit(model_forward)(x1, weight, bias)
    out = jax.block_until_ready(out)

    # Correctness check against plain-JAX reference.
    ref = jnp.einsum("...i,oi->...o", x1, weight) + bias
    assert out.shape == (2, 2, 2, 2, 2, 2)
    assert jnp.allclose(out, ref, atol=1e-5, rtol=1e-5)

    print("KERNEL_OK")
</pallas_src>

<mosaic_0001>
module attributes {stable_mosaic.version = 11 : i64} {
  func.func @_linear_vpu_kernel(%arg0: memref<32x2xf32, #tpu.memory_space<vmem>>, %arg1: memref<4xf32, #tpu.memory_space<smem>>, %arg2: memref<2xf32, #tpu.memory_space<smem>>, %arg3: memref<32x2xf32, #tpu.memory_space<vmem>>) attributes {dimension_semantics = [], scalar_prefetch = 0 : i64, scratch_operands = 0 : i64, tpu.core_type = #tpu.core_type<tc>} {
    %c0 = arith.constant 0 : index
    %c0_0 = arith.constant 0 : index
    %0 = vector.load %arg0[%c0, %c0_0] : memref<32x2xf32, #tpu.memory_space<vmem>>, vector<32x2xf32>
    %1 = vector.extract_strided_slice %0 {offsets = [0, 0], sizes = [32, 1], strides = [1, 1]} : vector<32x2xf32> to vector<32x1xf32>
    %c0_1 = arith.constant 0 : index
    %2 = memref.load %arg1[%c0_1] : memref<4xf32, #tpu.memory_space<smem>>
    %3 = vector.broadcast %2 : f32 to vector<32x1xf32>
    %4 = arith.mulf %1, %3 : vector<32x1xf32>
    %5 = vector.extract_strided_slice %0 {offsets = [0, 1], sizes = [32, 1], strides = [1, 1]} : vector<32x2xf32> to vector<32x1xf32>
    %c1 = arith.constant 1 : index
    %6 = memref.load %arg1[%c1] : memref<4xf32, #tpu.memory_space<smem>>
    %7 = vector.broadcast %6 : f32 to vector<32x1xf32>
    %8 = arith.mulf %5, %7 : vector<32x1xf32>
    %9 = arith.addf %4, %8 : vector<32x1xf32>
    %c0_2 = arith.constant 0 : index
    %10 = memref.load %arg2[%c0_2] : memref<2xf32, #tpu.memory_space<smem>>
    %11 = vector.broadcast %10 : f32 to vector<32x1xf32>
    %12 = arith.addf %9, %11 : vector<32x1xf32>
    %c0_3 = arith.constant 0 : index
    %c0_4 = arith.constant 0 : index
    %13 = vector.load %arg3[%c0_3, %c0_4] : memref<32x2xf32, #tpu.memory_space<vmem>>, vector<32x1xf32>
    tpu.vector_store %arg3[%c0_3, %c0_4], %12 {strides = array<i32>} : memref<32x2xf32, #tpu.memory_space<vmem>>, vector<32x1xf32>,
    %14 = vector.extract_strided_slice %0 {offsets = [0, 0], sizes = [32, 1], strides = [1, 1]} : vector<32x2xf32> to vector<32x1xf32>
    %c2 = arith.constant 2 : index
    %15 = memref.load %arg1[%c2] : memref<4xf32, #tpu.memory_space<smem>>
    %16 = vector.broadcast %15 : f32 to vector<32x1xf32>
    %17 = arith.mulf %14, %16 : vector<32x1xf32>
    %18 = vector.extract_strided_slice %0 {offsets = [0, 1], sizes = [32, 1], strides = [1, 1]} : vector<32x2xf32> to vector<32x1xf32>
    %c3 = arith.constant 3 : index
    %19 = memref.load %arg1[%c3] : memref<4xf32, #tpu.memory_space<smem>>
    %20 = vector.broadcast %19 : f32 to vector<32x1xf32>
    %21 = arith.mulf %18, %20 : vector<32x1xf32>
    %22 = arith.addf %17, %21 : vector<32x1xf32>
    %c1_5 = arith.constant 1 : index
    %23 = memref.load %arg2[%c1_5] : memref<2xf32, #tpu.memory_space<smem>>
    %24 = vector.broadcast %23 : f32 to vector<32x1xf32>
    %25 = arith.addf %22, %24 : vector<32x1xf32>
    %c0_6 = arith.constant 0 : index
    %c1_7 = arith.constant 1 : index
    %26 = vector.load %arg3[%c0_6, %c1_7] : memref<32x2xf32, #tpu.memory_space<vmem>>, vector<32x1xf32>
    tpu.vector_store %arg3[%c0_6, %c1_7], %25 {strides = array<i32>} : memref<32x2xf32, #tpu.memory_space<vmem>>, vector<32x1xf32>,
    return
  }
}

</mosaic_0001>

<llo_original>
// kernel: model_forward.1
$region0: #{model_forward.1}
  #allocation0 [shape = 'u32[]', space=smem, size = 0x4, offset = 0x4, fixed_abs, tag = 'smem constant byte address 0x4 - core index']
  #allocation1 [shape = 'u32[144,128]{1,0:T(1,128)}', space=vmem, size = 0x12000, scoped, tag = 'internal scratch']
  %s0 = inlined_call_operand.hbm [shape: f32[32,2], index: 0, kind: input, shape index: {}]
  %s1 = inlined_call_operand.vmem [shape: f32[4], index: 1, kind: input, shape index: {}]
  %s2 = inlined_call_operand.vmem [shape: f32[2], index: 2, kind: input, shape index: {}]
  %s3 = inlined_call_operand.hbm [shape: f32[32,2], index: 3, kind: output, shape index: {}]
  %s4 = sld [smem:[#allocation0]]
  $region34: #{model_forward.1} parent=0
    _
  %s6 = ssub.s32 1, %s4
  %s7 = scalar_select 0, %s6, %s4
  $region1: #{model_forward.1} parent=0
    #allocation2 [shape = 'u8[16384]{0}', space=vmem, size = 0x4000, scoped, tag = 'input window, operand 0, single buffered']
    #allocation3 [shape = 's32[1]{0}', space=sflag, size = 0x4, scoped, tag = 'scoped memory for model_forward.1']
    #allocation4 [shape = 's32[1]{0}', space=sflag, size = 0x4, scoped, tag = 'scoped memory for model_forward.1']
    #allocation5 [shape = 's32[1]{0}', space=sflag, size = 0x4, scoped, tag = 'scoped memory for model_forward.1']
    #allocation6 [shape = 'u8[512]{0}', space=smem, size = 0x200, scoped, tag = 'input window, operand 1, single buffered']
    #allocation7 [shape = 'u8[512]{0}', space=smem, size = 0x200, scoped, tag = 'input window, operand 2, single buffered']
    #allocation8 [shape = 's32[1]{0}', space=sflag, size = 0x4, scoped, tag = 'scoped memory for model_forward.1']
    #allocation9 [shape = 'u8[16384]{0}', space=vmem, size = 0x4000, scoped, tag = 'output window, operand 0, single buffered']
    %8 = vsyncpa [#allocation3], 0
    %9 = vsyncpa [#allocation5], 0
    %10 = vsyncpa [#allocation8], 0
    %11 = vsyncpa [#allocation4], 0
    // Predicated region
    $region2: #{model_forward.1} parent=1 // pred_check
      _
    $region3: #{model_forward.1} parent=1 // pred_check_branch
      %13 = sbr.rel (0) target = $region5
    $region4: #{model_forward.1} parent=1 // pred_region
      %s15 = ssub.s32 512, 512
      %16 = vsyncadd [#allocation3], %s15
      %s17 = sshll.u32 [#allocation2], 4
      %s18 = int_to_ptr.vmem [resolvable:$true] %s17
      %23 = dma.hbm_to_vmem [thread:$0]  %s0, 512, %s18, [#allocation3], 128, 128, 8
    $region5: #{model_forward.1} parent=1 // pred_fallthru
      _
    // Predicated region
    $region6: #{model_forward.1} parent=1 // pred_check
      _
    $region7: #{model_forward.1} parent=1 // pred_check_branch
      %25 = sbr.rel (0) target = $region9
    $region8: #{model_forward.1} parent=1 // pred_region
      %s27 = ssub.s32 16, 16
      %28 = vsyncadd [#allocation5], %s27
      %s30 = sshll.u32 %s1, 4
      %s31 = int_to_ptr.vmem [resolvable:$true] %s30
      %33 = dma.vmem_to_smem %s31, 16, [#allocation6], [#allocation5]
    $region9: #{model_forward.1} parent=1 // pred_fallthru
      _
    // Predicated region
    $region10: #{model_forward.1} parent=1 // pred_check
      _
    $region11: #{model_forward.1} parent=1 // pred_check_branch
      %35 = sbr.rel (0) target = $region13
    $region12: #{model_forward.1} parent=1 // pred_region
      %s37 = ssub.s32 16, 16
      %38 = vsyncadd [#allocation8], %s37
      %s40 = sshll.u32 %s2, 4
      %s41 = int_to_ptr.vmem [resolvable:$true] %s40
      %43 = dma.vmem_to_smem %s41, 16, [#allocation7], [#allocation8]
    $region13: #{model_forward.1} parent=1 // pred_fallthru
      _
    // Predicated region
    $region14: #{model_forward.1} parent=1 // pred_check
      _
    $region15: #{model_forward.1} parent=1 // pred_check_branch
      %45 = sbr.rel (0) target = $region17
    $region16: #{model_forward.1} parent=1 // pred_region
      %46 = dma.done [#allocation3], 512
    $region17: #{model_forward.1} parent=1 // pred_fallthru
      _
    // Predicated region
    $region18: #{model_forward.1} parent=1 // pred_check
      _
    $region19: #{model_forward.1} parent=1 // pred_check_branch
      %48 = sbr.rel (0) target = $region21
    $region20: #{model_forward.1} parent=1 // pred_region
      %49 = dma.done [#allocation5], 16
    $region21: #{model_forward.1} parent=1 // pred_fallthru
      _
    // Predicated region
    $region22: #{model_forward.1} parent=1 // pred_check
      _
    $region23: #{model_forward.1} parent=1 // pred_check_branch
      %51 = sbr.rel (0) target = $region25
    $region24: #{model_forward.1} parent=1 // pred_region
      %52 = dma.done [#allocation8], 16
    $region25: #{model_forward.1} parent=1 // pred_fallthru
      _
    %53 = sfence
    %v54 = vld [vmem:[#allocation2] sm:$0xff]
    %v55 = vld [vmem:[#allocation2 + $0x8] sm:$0xff]
    %v56 = vld [vmem:[#allocation2 + $0x10] sm:$0xff]
    %v57 = vld [vmem:[#allocation2 + $0x18] sm:$0xff]
    %s58 = sld [smem:[#allocation6]]
    %v59 = vstv %s58
    %v60 = vmul.f32 %v54, %v59
    %v61 = vmul.f32 %v55, %v59
    %v62 = vmul.f32 %v56, %v59
    %v63 = vmul.f32 %v57, %v59
    %s64 = sld [smem:[#allocation6 + $0x1]]
    %v65 = vstv %s64
    %v66 = vmul.f32 %v54, %v65
    %v67 = vmul.f32 %v55, %v65
    %v68 = vmul.f32 %v56, %v65
    %v69 = vmul.f32 %v57, %v65
    %74 = vrot.lane.b32.xlu0 %v66, 127
    %v75 = vpop.permute.xlu0 %74
    %76 = vrot.lane.b32.xlu0 %v67, 127
    %v77 = vpop.permute.xlu0 %76
    %78 = vrot.lane.b32.xlu0 %v68, 127
    %v79 = vpop.permute.xlu0 %78
    %80 = vrot.lane.b32.xlu0 %v69, 127
    %v81 = vpop.permute.xlu0 %80
    %v86 = vadd.f32 %v60, %v75
    %v87 = vadd.f32 %v61, %v77
    %v88 = vadd.f32 %v62, %v79
    %v89 = vadd.f32 %v63, %v81
    %s90 = sld [smem:[#allocation7]]
    %v91 = vstv %s90
    %v92 = vadd.f32 %v86, %v91
    %v93 = vadd.f32 %v87, %v91
    %v94 = vadd.f32 %v88, %v91
    %v95 = vadd.f32 %v89, %v91
    %vm96 = vcmask 7168
    %97 = vst.msk [vmem:[#allocation9] sm:$0xff] %vm96, %v92
    %98 = vst.msk [vmem:[#allocation9 + $0x8] sm:$0xff] %vm96, %v93
    %99 = vst.msk [vmem:[#allocation9 + $0x10] sm:$0xff] %vm96, %v94
    %100 = vst.msk [vmem:[#allocation9 + $0x18] sm:$0xff] %vm96, %v95
    %s101 = sld [smem:[#allocation6 + $0x2]]
    %v102 = vstv %s101
    %v103 = vmul.f32 %v54, %v102
    %v104 = vmul.f32 %v55, %v102
    %v105 = vmul.f32 %v56, %v102
    %v106 = vmul.f32 %v57, %v102
    %s107 = sld [smem:[#allocation6 + $0x3]]
    %v108 = vstv %s107
    %v109 = vmul.f32 %v54, %v108
    %v110 = vmul.f32 %v55, %v108
    %v111 = vmul.f32 %v56, %v108
    %v112 = vmul.f32 %v57, %v108
    %117 = vrot.lane.b32.xlu0 %v109, 127
    %v118 = vpop.permute.xlu0 %117
    %119 = vrot.lane.b32.xlu0 %v110, 127
    %v120 = vpop.permute.xlu0 %119
    %121 = vrot.lane.b32.xlu0 %v111, 127
    %v122 = vpop.permute.xlu0 %121
    %123 = vrot.lane.b32.xlu0 %v112, 127
    %v124 = vpop.permute.xlu0 %123
    %v129 = vadd.f32 %v103, %v118
    %v130 = vadd.f32 %v104, %v120
    %v131 = vadd.f32 %v105, %v122
    %v132 = vadd.f32 %v106, %v124
    %s133 = sld [smem:[#allocation7 + $0x1]]
    %v134 = vstv %s133
    %v135 = vadd.f32 %v129, %v134
    %v136 = vadd.f32 %v130, %v134
    %v137 = vadd.f32 %v131, %v134
    %v138 = vadd.f32 %v132, %v134
    %143 = vrot.lane.b32.xlu0 %v135, 1
    %v144 = vpop.permute.xlu0 %143
    %145 = vrot.lane.b32.xlu0 %v136, 1
    %v146 = vpop.permute.xlu0 %145
    %147 = vrot.lane.b32.xlu0 %v137, 1
    %v148 = vpop.permute.xlu0 %147
    %149 = vrot.lane.b32.xlu0 %v138, 1
    %v150 = vpop.permute.xlu0 %149
    %vm155 = vcmask 15368
    %156 = vst.msk [vmem:[#allocation9] sm:$0xff] %vm155, %v144
    %157 = vst.msk [vmem:[#allocation9 + $0x8] sm:$0xff] %vm155, %v146
    %158 = vst.msk [vmem:[#allocation9 + $0x10] sm:$0xff] %vm155, %v148
    %159 = vst.msk [vmem:[#allocation9 + $0x18] sm:$0xff] %vm155, %v150
    // Predicated region
    $region26: #{model_forward.1} parent=1 // pred_check
      _
    $region27: #{model_forward.1} parent=1 // pred_check_branch
      %161 = sbr.rel (0) target = $region29
    $region28: #{model_forward.1} parent=1 // pred_region
      %s163 = ssub.s32 512, 512
      %164 = vsyncadd [#allocation4], %s163
      %s165 = sshll.u32 [#allocation9], 4
      %s166 = int_to_ptr.vmem [resolvable:$true] %s165
      %171 = dma.vmem_to_hbm [thread:$0]  %s166, 512, %s3, [#allocation4], 128, 128, 8
    $region29: #{model_forward.1} parent=1 // pred_fallthru
      _
    // Predicated region
    $region30: #{model_forward.1} parent=1 // pred_check
      _
    $region31: #{model_forward.1} parent=1 // pred_check_branch
      %173 = sbr.rel (0) target = $region33
    $region32: #{model_forward.1} parent=1 // pred_region
      %174 = dma.done [#allocation4], 512
    $region33: #{model_forward.1} parent=1 // pred_fallthru
      _
    %175 = vsyncpa [#allocation3], 1
    %176 = vsyncpa [#allocation4], 1
    %177 = vsyncpa [#allocation5], 1
    %178 = vsyncpa [#allocation8], 1

</llo_original>
